<compile_context>
chip_gen: v7x
topology: tpu7x:2x2x1
jax: 0.10.0
libtpu: 0.0.40
codegen_flags: <defaults>
</compile_context>

<pallas_src>
import functools

import jax
import jax.numpy as jnp
from jax.experimental import pallas as pl
from jax.experimental.pallas import tpu as pltpu


_LANE = 128
_SUBLANE = 8


def _round_up(v: int, m: int) -> int:
    return (v + m - 1) // m * m


def _sublane_multiple(itemsize: int) -> int:
    # f32 -> 8, bf16 -> 16, int8/fp8 -> 32 (sub-32-bit dtypes pack along sublanes).
    return _SUBLANE * max(1, 4 // itemsize)


def _padded_tile_bytes(rows: int, cols: int, itemsize: int) -> int:
    """VMEM bytes of a (rows, cols) tile after (sublane, lane) layout padding."""
    return _round_up(rows, _sublane_multiple(itemsize)) * _round_up(cols, _LANE) * itemsize


def _vmem_limit(footprint_bytes: int) -> int:
    # Actual footprint + slack, floored so tiny kernels don't get starved.
    return int(max(footprint_bytes + (4 << 20), 8 << 20))


# --------------------------------------------------------------------------- #
# Kernels
# --------------------------------------------------------------------------- #
def _gap_full_kernel(x_ref, o_ref, *, inv_hw):
    """Full-spatial-extent pooling: x_ref (TN, C, HW) -> o_ref (TN, C)."""
    x = x_ref[...].astype(jnp.float32)                 # f32 accumulation
    o_ref[...] = (jnp.sum(x, axis=-1) * inv_hw).astype(o_ref.dtype)


def _gap_split_kernel(x_ref, o_ref, acc_ref, *, inv_hw, hw, thw, mask_tail):
    """Spatially-tiled pooling.

    x_ref:   (TN, C, THW) spatial chunk k of TN samples
    o_ref:   (TN, C)      pooled output tile (written on last spatial chunk)
    acc_ref: (TN, C)      f32 accumulator scratch (resident across the HW axis)
    """
    k = pl.program_id(1)

    @pl.when(k == 0)
    def _():
        acc_ref[...] = jnp.zeros_like(acc_ref)

    x = x_ref[...].astype(jnp.float32)
    if mask_tail:
        # Partial tail chunk: zero out lanes beyond the true HW (no HBM pad pass).
        lane = jax.lax.broadcasted_iota(jnp.int32, x.shape, 2)
        x = jnp.where(lane + k * thw < hw, x, 0.0)
    acc_ref[...] += jnp.sum(x, axis=-1)

    @pl.when(k == pl.num_programs(1) - 1)
    def _():
        o_ref[...] = (acc_ref[...] * inv_hw).astype(o_ref.dtype)


# --------------------------------------------------------------------------- #
# Wrapper
# --------------------------------------------------------------------------- #
def global_avg_pool(x_nchw: jax.Array, *, target_block_bytes: int = 4 << 20) -> jax.Array:
    """Adaptive average pooling to 1x1: NCHW [N, C, H, W] -> [N, C]."""
    n, c, h, w = x_nchw.shape
    hw = h * w
    x = x_nchw.reshape(n, c, hw)          # merges contiguous trailing dims: no HBM pass
    itemsize = jnp.dtype(x.dtype).itemsize
    inv_hw = 1.0 / float(hw)

    # VMEM-layout footprint of one sample's full (C, HW) map.
    sample_bytes = _padded_tile_bytes(c, hw, itemsize)

    # ---- sample-axis tiling (output block (tn, C) needs tn % 8 == 0 or tn == N) ----
    if n <= _SUBLANE:
        tn = n                                            # single full-extent N block
    else:
        tn_cap = max(_SUBLANE,
                     (target_block_bytes // max(sample_bytes, 1)) // _SUBLANE * _SUBLANE)
        tn_two = _round_up(-(-n // 2), _SUBLANE)          # >=2 N blocks for v7x's 2 TCs
        tn = min(tn_cap, tn_two)

    out_block_bytes = _padded_tile_bytes(tn, c, itemsize)

    if tn * sample_bytes <= 2 * target_block_bytes:
        # -------- fast path: full spatial extent per block, no scratch, 1-D grid ----
        grid = (pl.cdiv(n, tn),)
        footprint = 2 * tn * sample_bytes + 2 * out_block_bytes
        return pl.pallas_call(
            functools.partial(_gap_full_kernel, inv_hw=inv_hw),
            out_shape=jax.ShapeDtypeStruct((n, c), x_nchw.dtype),
            grid_spec=pltpu.PrefetchScalarGridSpec(
                num_scalar_prefetch=0,
                grid=grid,
                in_specs=[pl.BlockSpec((tn, c, hw), lambda i: (i, 0, 0))],
                out_specs=pl.BlockSpec((tn, c), lambda i: (i, 0)),
            ),
            compiler_params=pltpu.CompilerParams(
                dimension_semantics=("parallel",),
                vmem_limit_bytes=_vmem_limit(footprint),
            ),
        )(x)

    # -------- split path: tile the spatial axis (multiples of 128), reduce across
    #          a trailing "arbitrary" grid axis into a resident f32 accumulator ----
    per_lane_bytes = tn * _round_up(c, _sublane_multiple(itemsize)) * itemsize
    thw = max(_LANE, (target_block_bytes // per_lane_bytes) // _LANE * _LANE)
    mask_tail = (hw % thw) != 0
    grid = (pl.cdiv(n, tn), pl.cdiv(hw, thw))

    in_block_bytes = per_lane_bytes * thw
    acc_bytes = _padded_tile_bytes(tn, c, 4)
    footprint = 2 * in_block_bytes + 2 * out_block_bytes + acc_bytes

    return pl.pallas_call(
        functools.partial(_gap_split_kernel, inv_hw=inv_hw, hw=hw, thw=thw,
                          mask_tail=mask_tail),
        out_shape=jax.ShapeDtypeStruct((n, c), x_nchw.dtype),
        grid_spec=pltpu.PrefetchScalarGridSpec(
            num_scalar_prefetch=0,
            grid=grid,
            in_specs=[pl.BlockSpec((tn, c, thw), lambda i, k: (i, 0, k))],
            out_specs=pl.BlockSpec((tn, c), lambda i, k: (i, 0)),
            scratch_shapes=[pltpu.VMEM((tn, c), jnp.float32)],
        ),
        compiler_params=pltpu.CompilerParams(
            dimension_semantics=("parallel", "arbitrary"),
            vmem_limit_bytes=_vmem_limit(footprint),
        ),
    )(x)


# --------------------------------------------------------------------------- #
# Module forward (AbstractOutlierDetector with Identity pre/post transforms)
# --------------------------------------------------------------------------- #
def identity_transformer(support_features, query_features):
    # IdentityTransformer: no-op on both feature sets.
    return support_features, query_features


def transform_features(support_features, query_features):
    """Mirrors AbstractOutlierDetector.transform_features with Identity transforms."""
    support_features, query_features = identity_transformer(support_features, query_features)
    # pool_features: two independent pallas_calls (no HBM concat pre-pass).
    query_features = global_avg_pool(query_features)
    support_features = global_avg_pool(support_features)
    support_features, query_features = identity_transformer(support_features, query_features)
    return support_features, query_features


def abstract_outlier_detector_forward(support_features, support_labels,
                                      query_features, query_labels):
    support_vecs, query_vecs = transform_features(support_features, query_features)
    # TODO(synk): detect_outliers() is abstract (raises NotImplementedError) in the
    # reference module; concrete subclasses define it. We return the transformed features.
    return support_vecs, query_vecs


if __name__ == "__main__":
    key = jax.random.PRNGKey(0)
    k1, k2, k3, k4 = jax.random.split(key, 4)

    # Small shapes consistent with the module (NCHW feature maps).
    n_support, n_query, c, h, w = 3, 2, 4, 16, 16
    support_features = jax.random.normal(k1, (n_support, c, h, w), dtype=jnp.float32)
    query_features = jax.random.normal(k2, (n_query, c, h, w), dtype=jnp.float32)
    support_labels = jax.random.randint(k3, (n_support,), 0, 2)
    query_labels = jax.random.randint(k4, (n_query,), 0, 2)

    support_vecs, query_vecs = abstract_outlier_detector_forward(
        support_features, support_labels, query_features, query_labels)
    jax.block_until_ready((support_vecs, query_vecs))

    ref_support = support_features.mean(axis=(2, 3))
    ref_query = query_features.mean(axis=(2, 3))
    assert support_vecs.shape == (n_support, c)
    assert query_vecs.shape == (n_query, c)
    assert jnp.allclose(support_vecs, ref_support, atol=1e-5)
    assert jnp.allclose(query_vecs, ref_query, atol=1e-5)

    # Fast path with N > 8: two parallel N-blocks (tn=8), partial last block.
    xa = jax.random.normal(k2, (10, 4, 16, 16), dtype=jnp.float32)
    got_a = global_avg_pool(xa)
    jax.block_until_ready(got_a)
    assert got_a.shape == (10, 4)
    assert jnp.allclose(got_a, xa.mean(axis=(2, 3)), atol=1e-5)

    # Split path with in-kernel tail masking: hw=153 -> thw=128 chunks (2 spatial
    # blocks, last one partial), n=10 -> tn=8 with a partial last N block.
    xb = jax.random.normal(k1, (10, 4, 9, 17), dtype=jnp.float32)
    got_b = global_avg_pool(xb, target_block_bytes=1024)
    jax.block_until_ready(got_b)
    assert got_b.shape == (10, 4)
    assert jnp.allclose(got_b, xb.mean(axis=(2, 3)), atol=1e-5)

    # bf16 input, small non-128-multiple HW (full-extent block), f32 accumulation.
    xc = jax.random.normal(k3, (5, 256, 7, 7), dtype=jnp.bfloat16)
    got_c = global_avg_pool(xc)
    jax.block_until_ready(got_c)
    ref_c = xc.astype(jnp.float32).mean(axis=(2, 3))
    assert got_c.shape == (5, 256) and got_c.dtype == jnp.bfloat16
    assert jnp.allclose(got_c.astype(jnp.float32), ref_c, atol=1e-2)

    print("KERNEL_OK")
</pallas_src>

<mosaic_0001>
module attributes {stable_mosaic.version = 11 : i64} {
  func.func @_gap_full_kernel(%arg0: i32, %arg1: memref<2x4x256xf32, #tpu.memory_space<vmem>>, %arg2: memref<2x4xf32, #tpu.memory_space<vmem>>) attributes {dimension_semantics = [#tpu.dimension_semantics<parallel>], iteration_bounds = array<i64: 1>, scalar_prefetch = 0 : i64, scratch_operands = 0 : i64, tpu.core_type = #tpu.core_type<tc>, window_params = [{transform_indices = @transform_0, window_bounds = array<i64: 2, 4, 256>}, {transform_indices = @transform_1, window_bounds = array<i64: 2, 4>}]} {
    %c0 = arith.constant 0 : index
    %c0_0 = arith.constant 0 : index
    %c0_1 = arith.constant 0 : index
    %0 = vector.load %arg1[%c0, %c0_0, %c0_1] : memref<2x4x256xf32, #tpu.memory_space<vmem>>, vector<2x4x256xf32>
    %cst = arith.constant dense<0.000000e+00> : vector<2x4xf32>
    %1 = vector.multi_reduction <add>, %0, %cst [2] : vector<2x4x256xf32> to vector<2x4xf32>
    %cst_2 = arith.constant 3.906250e-03 : f32
    %2 = vector.broadcast %cst_2 : f32 to vector<2x4xf32>
    %3 = arith.mulf %1, %2 : vector<2x4xf32>
    %c0_3 = arith.constant 0 : index
    %c0_4 = arith.constant 0 : index
    %4 = vector.load %arg2[%c0_3, %c0_4] : memref<2x4xf32, #tpu.memory_space<vmem>>, vector<2x4xf32>
    tpu.vector_store %arg2[%c0_3, %c0_4], %3 {strides = array<i32>} : memref<2x4xf32, #tpu.memory_space<vmem>>, vector<2x4xf32>,
    return
  }
  func.func @transform_0(%arg0: i32) -> (i32, i32, i32) {
    %c0_i32 = arith.constant 0 : i32
    %c0_i32_0 = arith.constant 0 : i32
    %c0_i32_1 = arith.constant 0 : i32
    return %arg0, %c0_i32, %c0_i32_0 : i32, i32, i32
  }
  func.func @transform_1(%arg0: i32) -> (i32, i32) {
    %c0_i32 = arith.constant 0 : i32
    %c0_i32_0 = arith.constant 0 : i32
    return %arg0, %c0_i32 : i32, i32
  }
}

</mosaic_0001>

<llo_original>
// kernel: tpu_custom_call.1
$region0: #{tpu_custom_call.1}
  #allocation0 [shape = 'u32[]', space=smem, size = 0x4, offset = 0x4, fixed_abs, tag = 'smem constant byte address 0x4 - core index']
  #allocation1 [shape = 'u32[144,128]{1,0:T(1,128)}', space=vmem, size = 0x12000, scoped, tag = 'internal scratch']
  %s0 = inlined_call_operand.hbm [shape: f32[2,4,256], index: 0, kind: input, shape index: {}]
  %s1 = inlined_call_operand.hbm [shape: f32[2,4], index: 1, kind: output, shape index: {}]
  %s2 = sld [smem:[#allocation0]]
  $region18: #{tpu_custom_call.1} parent=0
    _
  %s4 = ssub.s32 1, %s2
  %s5 = scalar_select 0, %s4, %s2
  $region1: #{tpu_custom_call.1} parent=0
    #allocation2 [shape = 'u8[8192]{0}', space=vmem, size = 0x2000, scoped, tag = 'input window, operand 0, single buffered']
    #allocation3 [shape = 's32[1]{0}', space=sflag, size = 0x4, scoped, tag = 'scoped memory for tpu_custom_call.1']
    #allocation4 [shape = 's32[1]{0}', space=sflag, size = 0x4, scoped, tag = 'scoped memory for tpu_custom_call.1']
    #allocation5 [shape = 'u8[1024]{0}', space=vmem, size = 0x400, scoped, tag = 'output window, operand 0, single buffered']
    %6 = vsyncpa [#allocation3], 0
    %7 = vsyncpa [#allocation4], 0
    // Predicated region
    $region2: #{tpu_custom_call.1} parent=1 // pred_check
      _
    $region3: #{tpu_custom_call.1} parent=1 // pred_check_branch
      %9 = sbr.rel (0) target = $region5
    $region4: #{tpu_custom_call.1} parent=1 // pred_region
      %s11 = ssub.s32 256, 256
      %12 = vsyncadd [#allocation3], %s11
      %s13 = sshll.u32 [#allocation2], 4
      %s14 = int_to_ptr.vmem [resolvable:$true] %s13
      %19 = dma.hbm_to_vmem [thread:$0]  %s0, 256, %s14, [#allocation3], 128, 128, 8
    $region5: #{tpu_custom_call.1} parent=1 // pred_fallthru
      _
    // Predicated region
    $region6: #{tpu_custom_call.1} parent=1 // pred_check
      _
    $region7: #{tpu_custom_call.1} parent=1 // pred_check_branch
      %21 = sbr.rel (0) target = $region9
    $region8: #{tpu_custom_call.1} parent=1 // pred_region
      %22 = dma.done [#allocation3], 256
    $region9: #{tpu_custom_call.1} parent=1 // pred_fallthru
      _
    %v23 = vld [vmem:[#allocation2] sm:$0xff]
    %v24 = vld [vmem:[#allocation2 + $0x8] sm:$0xff]
    %v27 = vcombine.high %v23, %v23
    %v28 = vcombine.high %v24, %v24
    %vm31 = vcmask 1043456
    %v32 = vsel %vm31, %v23, 0.0
    %v33 = vsel %vm31, %v27, 0.0
    %v34 = vadd.f32 %v32, %v33
    %35 = vadd.xlane.f32.xlu0 %v34
    %v36 = vpop.xlane.xlu0 %35
    %v37 = vsel %vm31, %v24, 0.0
    %v38 = vsel %vm31, %v28, 0.0
    %v39 = vadd.f32 %v37, %v38
    %40 = vadd.xlane.f32.xlu0 %v39
    %v41 = vpop.xlane.xlu0 %40
    %v42 = vmul.f32 %v36, 0.00390625
    %v43 = vmul.f32 %v41, 0.00390625
    %v46 = vlaneseq
    %v47 = vand.u32 %v46, 127
    %v48 = vlaneseq
    %v49 = vshrl.u32 %v48, 7
    %v50 = vsub.s32 %v47, %v49
    %v51 = vrot.slane %v42, %v50
    %v52 = vlaneseq
    %v53 = vshrl.u32 %v52, 7
    %v54 = vsub.s32 %v47, %v53
    %v55 = vrot.slane %v43, %v54
    %vm56 = vcmask 1041409
    %v57 = vsel %vm56, %v55, %v51
    %vm59 = vcmask 25600
    %60 = vst.msk [vmem:[#allocation5] sm:$0x3] %vm59, %v57
    // Predicated region
    $region10: #{tpu_custom_call.1} parent=1 // pred_check
      _
    $region11: #{tpu_custom_call.1} parent=1 // pred_check_branch
      %62 = sbr.rel (0) target = $region13
    $region12: #{tpu_custom_call.1} parent=1 // pred_region
      %s64 = ssub.s32 32, 32
      %65 = vsyncadd [#allocation4], %s64
      %s67 = sshll.u32 [#allocation5], 4
      %s68 = int_to_ptr.vmem [resolvable:$true] %s67
      %70 = dma.vmem_to_hbm [thread:$0]  %s68, 32, %s1, [#allocation4]
    $region13: #{tpu_custom_call.1} parent=1 // pred_fallthru
      _
    // Predicated region
    $region14: #{tpu_custom_call.1} parent=1 // pred_check
      _
    $region15: #{tpu_custom_call.1} parent=1 // pred_check_branch
      %72 = sbr.rel (0) target = $region17
    $region16: #{tpu_custom_call.1} parent=1 // pred_region
      %73 = dma.done [#allocation4], 32
    $region17: #{tpu_custom_call.1} parent=1 // pred_fallthru
      _
    %74 = vsyncpa [#allocation3], 1
    %75 = vsyncpa [#allocation4], 1

</llo_original>
